<compile_context>
chip_gen: v7x
topology: tpu7x:2x2x1
jax: 0.10.0
libtpu: 0.0.40
codegen_flags: <defaults>
</compile_context>

<pallas_src>
import functools

import jax
import jax.numpy as jnp
from jax.experimental import pallas as pl
from jax.experimental.pallas import tpu as pltpu

# ---- synthetic config (mirrors config.settings keys) -------------------------
BB_OUTPUT = 32                 # config.settings['bb_output']
F_HID     = BB_OUTPUT // 2
F_DIMS    = 16                 # config.settings['F_dims']
NUM_C     = 8                  # config.settings['num_C'][src_dataset]
C_IN      = 4
H = W     = 16
KH = KW   = 3
K_IM2COL  = KH * KW * C_IN     # 36
K_PAD     = 128                # contraction dim padded to a full lane width
NUM_C_PAD = 128                # lane-dense logits store; sliced to NUM_C outside


# ---- fused kernel: conv3x3(im2col matmul) + ReLU + GAP + Fs(2x Linear+ReLU) + M ----
def _fused_kernel(nb, xcol_ref, gw_ref, gb_ref, w1_ref, b1_ref, w2_ref, b2_ref,
                  w3_ref, b3_ref, logits_ref):
    # xcol_ref:   (nb*H*W, K_PAD)  im2col rows for nb images (K zero-padded 36->128)
    # gw_ref:     (K_PAD, BB_OUTPUT) conv weight reshaped+padded in the wrapper
    # logits_ref: (nb, NUM_C_PAD)
    conv = jnp.dot(xcol_ref[...], gw_ref[...], preferred_element_type=jnp.float32)
    conv = jnp.maximum(conv + gb_ref[...], 0.0)                      # bias + ReLU
    feat = jnp.mean(conv.reshape(nb, H * W, BB_OUTPUT), axis=1)      # global average pool
    h = jnp.maximum(jnp.dot(feat, w1_ref[...],
                            preferred_element_type=jnp.float32) + b1_ref[...], 0.0)
    h = jnp.maximum(jnp.dot(h, w2_ref[...],
                            preferred_element_type=jnp.float32) + b2_ref[...], 0.0)
    logits_ref[...] = jnp.dot(h, w3_ref[...],
                              preferred_element_type=jnp.float32) + b3_ref[...]


# ---- params ------------------------------------------------------------------
def init_params(key):
    ks = jax.random.split(key, 4)
    scale = 0.1
    return dict(
        g_w=scale * jax.random.normal(ks[0], (KH, KW, C_IN, BB_OUTPUT), jnp.float32),
        g_b=jnp.zeros((1, BB_OUTPUT), jnp.float32),
        f_w1=scale * jax.random.normal(ks[1], (BB_OUTPUT, F_HID), jnp.float32),
        f_b1=jnp.zeros((1, F_HID), jnp.float32),
        f_w2=scale * jax.random.normal(ks[2], (F_HID, F_DIMS), jnp.float32),
        f_b2=jnp.zeros((1, F_DIMS), jnp.float32),
        m_w=scale * jax.random.normal(ks[3], (F_DIMS, NUM_C), jnp.float32),
        m_b=jnp.zeros((1, NUM_C), jnp.float32),
    )


# ---- wrapper -----------------------------------------------------------------
@jax.jit
def single_source_net_forward(x_nchw, params):
    N = x_nchw.shape[0]
    # Batch tile: (nb*256, 128) fp32 im2col block is ~128 KiB/image (double-buffered), so
    # nb=32 stays far under v7x's 32 MiB default scoped VMEM; for large N this also keeps
    # >=2 "parallel" grid steps so v7x's second TensorCore gets work.
    nb = min(N, 32)
    n_blocks = pl.cdiv(N, nb)
    n_pad = n_blocks * nb

    # ---- layout plumbing in the wrapper (off the TensorCore) ----
    x = jnp.transpose(x_nchw, (0, 2, 3, 1)).astype(jnp.float32)       # NCHW -> NHWC
    x_p = jnp.pad(x, ((0, 0), (1, 1), (1, 1), (0, 0)))                # SAME pad for 3x3
    # im2col: concat the 9 shifted HxW patches along channel (kh outer, kw, cin inner)
    patches = [x_p[:, kh:kh + H, kw:kw + W, :] for kh in range(KH) for kw in range(KW)]
    xcol = jnp.concatenate(patches, axis=-1).reshape(N, H * W, K_IM2COL)
    xcol = jnp.pad(xcol, ((0, n_pad - N), (0, 0), (0, K_PAD - K_IM2COL)))
    xcol = xcol.reshape(n_pad * H * W, K_PAD)                         # lane-dense LHS slab

    # conv weight -> (K, BB_OUTPUT), zero-padded on K; classifier padded to 128 lanes.
    gw = jnp.pad(params["g_w"].reshape(K_IM2COL, BB_OUTPUT),
                 ((0, K_PAD - K_IM2COL), (0, 0)))
    mw = jnp.pad(params["m_w"], ((0, 0), (0, NUM_C_PAD - NUM_C)))
    mb = jnp.pad(params["m_b"], ((0, 0), (0, NUM_C_PAD - NUM_C)))

    def full(shape):  # whole-array block, VMEM-resident across all grid steps
        return pl.BlockSpec(shape, lambda i, _s=shape: tuple(0 for _ in _s))

    logits = pl.pallas_call(
        functools.partial(_fused_kernel, nb),
        out_shape=jax.ShapeDtypeStruct((n_pad, NUM_C_PAD), jnp.float32),
        grid=(n_blocks,),
        in_specs=[
            pl.BlockSpec((nb * H * W, K_PAD), lambda i: (i, 0)),      # im2col rows
            full((K_PAD, BB_OUTPUT)),                                 # conv weight
            full((1, BB_OUTPUT)),                                     # conv bias
            full((BB_OUTPUT, F_HID)),  full((1, F_HID)),              # Fs layer 1
            full((F_HID, F_DIMS)),     full((1, F_DIMS)),             # Fs layer 2
            full((F_DIMS, NUM_C_PAD)), full((1, NUM_C_PAD)),          # M classifier (padded)
        ],
        out_specs=pl.BlockSpec((nb, NUM_C_PAD), lambda i: (i, 0)),
        compiler_params=pltpu.CompilerParams(dimension_semantics=("parallel",)),
    )(xcol, gw, params["g_b"], params["f_w1"], params["f_b1"],
      params["f_w2"], params["f_b2"], mw, mb)

    return logits[:N, :NUM_C]


# ---- pure-JAX reference --------------------------------------------------------
def _reference(x_nchw, p):
    x = jnp.transpose(x_nchw, (0, 2, 3, 1)).astype(jnp.float32)
    y = jax.lax.conv_general_dilated(x, p["g_w"], (1, 1), "SAME",
                                     dimension_numbers=("NHWC", "HWIO", "NHWC"))
    y = jnp.maximum(y + p["g_b"].reshape(1, 1, 1, -1), 0.0)
    feat = jnp.mean(y, axis=(1, 2))
    h = jnp.maximum(feat @ p["f_w1"] + p["f_b1"], 0.0)
    h = jnp.maximum(h @ p["f_w2"] + p["f_b2"], 0.0)
    return h @ p["m_w"] + p["m_b"]


if __name__ == "__main__":
    key = jax.random.PRNGKey(0)
    kx, kp = jax.random.split(key)
    x = jax.random.normal(kx, (2, C_IN, H, W), jnp.float32)   # PyTorch-style NCHW input
    params = init_params(kp)

    out = single_source_net_forward(x, params)
    jax.block_until_ready(out)

    ref = _reference(x, params)
    assert out.shape == (2, NUM_C)
    assert jnp.allclose(out, ref, atol=1e-3, rtol=1e-3), "mismatch vs JAX reference"
    print("KERNEL_OK")
</pallas_src>

<mosaic_0001>
module attributes {stable_mosaic.version = 11 : i64} {
  func.func @_fused_kernel(%arg0: i32, %arg1: memref<512x128xf32, #tpu.memory_space<vmem>>, %arg2: memref<128x32xf32, #tpu.memory_space<vmem>>, %arg3: memref<1x32xf32, #tpu.memory_space<vmem>>, %arg4: memref<32x16xf32, #tpu.memory_space<vmem>>, %arg5: memref<1x16xf32, #tpu.memory_space<vmem>>, %arg6: memref<16x16xf32, #tpu.memory_space<vmem>>, %arg7: memref<1x16xf32, #tpu.memory_space<vmem>>, %arg8: memref<16x128xf32, #tpu.memory_space<vmem>>, %arg9: memref<1x128xf32, #tpu.memory_space<vmem>>, %arg10: memref<2x128xf32, #tpu.memory_space<vmem>>) attributes {dimension_semantics = [#tpu.dimension_semantics<parallel>], iteration_bounds = array<i64: 1>, scalar_prefetch = 0 : i64, scratch_operands = 0 : i64, tpu.core_type = #tpu.core_type<tc>, window_params = [{transform_indices = @transform_0, window_bounds = array<i64: 512, 128>}, {pipeline_mode = #tpu.pipeline_mode<synchronous>, transform_indices = @transform_1, window_bounds = array<i64: 128, 32>}, {pipeline_mode = #tpu.pipeline_mode<synchronous>, transform_indices = @transform_2, window_bounds = array<i64: 1, 32>}, {pipeline_mode = #tpu.pipeline_mode<synchronous>, transform_indices = @transform_3, window_bounds = array<i64: 32, 16>}, {pipeline_mode = #tpu.pipeline_mode<synchronous>, transform_indices = @transform_4, window_bounds = array<i64: 1, 16>}, {pipeline_mode = #tpu.pipeline_mode<synchronous>, transform_indices = @transform_5, window_bounds = array<i64: 16, 16>}, {pipeline_mode = #tpu.pipeline_mode<synchronous>, transform_indices = @transform_6, window_bounds = array<i64: 1, 16>}, {pipeline_mode = #tpu.pipeline_mode<synchronous>, transform_indices = @transform_7, window_bounds = array<i64: 16, 128>}, {pipeline_mode = #tpu.pipeline_mode<synchronous>, transform_indices = @transform_8, window_bounds = array<i64: 1, 128>}, {transform_indices = @transform_9, window_bounds = array<i64: 2, 128>}]} {
    %c0 = arith.constant 0 : index
    %c0_0 = arith.constant 0 : index
    %0 = vector.load %arg1[%c0, %c0_0] : memref<512x128xf32, #tpu.memory_space<vmem>>, vector<512x128xf32>
    %c0_1 = arith.constant 0 : index
    %c0_2 = arith.constant 0 : index
    %1 = vector.load %arg2[%c0_1, %c0_2] : memref<128x32xf32, #tpu.memory_space<vmem>>, vector<128x32xf32>
    %cst = arith.constant dense<0.000000e+00> : vector<512x32xf32>
    %2 = tpu.matmul %0, %1, %cst {dimension_numbers = #tpu.dot_dimension_numbers<[1], [0], [0], [1], [0, 0, 1, 1], [], []>} : vector<512x128xf32>, vector<128x32xf32>, vector<512x32xf32> -> vector<512x32xf32>
    %c0_3 = arith.constant 0 : index
    %c0_4 = arith.constant 0 : index
    %3 = vector.load %arg3[%c0_3, %c0_4] : memref<1x32xf32, #tpu.memory_space<vmem>>, vector<1x32xf32>
    %4 = vector.broadcast %3 : vector<1x32xf32> to vector<512x32xf32>
    %5 = arith.addf %2, %4 : vector<512x32xf32>
    %cst_5 = arith.constant 0.000000e+00 : f32
    %6 = vector.broadcast %cst_5 : f32 to vector<512x32xf32>
    %7 = arith.maximumf %5, %6 : vector<512x32xf32>
    %8 = vector.shape_cast %7 : vector<512x32xf32> to vector<2x256x32xf32>
    %cst_6 = arith.constant dense<0.000000e+00> : vector<2x32xf32>
    %9 = vector.multi_reduction <add>, %8, %cst_6 [1] : vector<2x256x32xf32> to vector<2x32xf32>
    %cst_7 = arith.constant 2.560000e+02 : f32
    %10 = vector.broadcast %cst_7 : f32 to vector<2x32xf32>
    %11 = arith.divf %9, %10 : vector<2x32xf32>
    %c0_8 = arith.constant 0 : index
    %c0_9 = arith.constant 0 : index
    %12 = vector.load %arg4[%c0_8, %c0_9] : memref<32x16xf32, #tpu.memory_space<vmem>>, vector<32x16xf32>
    %cst_10 = arith.constant dense<0.000000e+00> : vector<2x16xf32>
    %13 = tpu.matmul %11, %12, %cst_10 {dimension_numbers = #tpu.dot_dimension_numbers<[1], [0], [0], [1], [0, 0, 1, 1], [], []>} : vector<2x32xf32>, vector<32x16xf32>, vector<2x16xf32> -> vector<2x16xf32>
    %c0_11 = arith.constant 0 : index
    %c0_12 = arith.constant 0 : index
    %14 = vector.load %arg5[%c0_11, %c0_12] : memref<1x16xf32, #tpu.memory_space<vmem>>, vector<1x16xf32>
    %15 = vector.broadcast %14 : vector<1x16xf32> to vector<2x16xf32>
    %16 = arith.addf %13, %15 : vector<2x16xf32>
    %cst_13 = arith.constant 0.000000e+00 : f32
    %17 = vector.broadcast %cst_13 : f32 to vector<2x16xf32>
    %18 = arith.maximumf %16, %17 : vector<2x16xf32>
    %c0_14 = arith.constant 0 : index
    %c0_15 = arith.constant 0 : index
    %19 = vector.load %arg6[%c0_14, %c0_15] : memref<16x16xf32, #tpu.memory_space<vmem>>, vector<16x16xf32>
    %cst_16 = arith.constant dense<0.000000e+00> : vector<2x16xf32>
    %20 = tpu.matmul %18, %19, %cst_16 {dimension_numbers = #tpu.dot_dimension_numbers<[1], [0], [0], [1], [0, 0, 1, 1], [], []>} : vector<2x16xf32>, vector<16x16xf32>, vector<2x16xf32> -> vector<2x16xf32>
    %c0_17 = arith.constant 0 : index
    %c0_18 = arith.constant 0 : index
    %21 = vector.load %arg7[%c0_17, %c0_18] : memref<1x16xf32, #tpu.memory_space<vmem>>, vector<1x16xf32>
    %22 = vector.broadcast %21 : vector<1x16xf32> to vector<2x16xf32>
    %23 = arith.addf %20, %22 : vector<2x16xf32>
    %cst_19 = arith.constant 0.000000e+00 : f32
    %24 = vector.broadcast %cst_19 : f32 to vector<2x16xf32>
    %25 = arith.maximumf %23, %24 : vector<2x16xf32>
    %c0_20 = arith.constant 0 : index
    %c0_21 = arith.constant 0 : index
    %26 = vector.load %arg8[%c0_20, %c0_21] : memref<16x128xf32, #tpu.memory_space<vmem>>, vector<16x128xf32>
    %cst_22 = arith.constant dense<0.000000e+00> : vector<2x128xf32>
    %27 = tpu.matmul %25, %26, %cst_22 {dimension_numbers = #tpu.dot_dimension_numbers<[1], [0], [0], [1], [0, 0, 1, 1], [], []>} : vector<2x16xf32>, vector<16x128xf32>, vector<2x128xf32> -> vector<2x128xf32>
    %c0_23 = arith.constant 0 : index
    %c0_24 = arith.constant 0 : index
    %28 = vector.load %arg9[%c0_23, %c0_24] : memref<1x128xf32, #tpu.memory_space<vmem>>, vector<1x128xf32>
    %29 = vector.broadcast %28 : vector<1x128xf32> to vector<2x128xf32>
    %30 = arith.addf %27, %29 : vector<2x128xf32>
    %c0_25 = arith.constant 0 : index
    %c0_26 = arith.constant 0 : index
    %31 = vector.load %arg10[%c0_25, %c0_26] : memref<2x128xf32, #tpu.memory_space<vmem>>, vector<2x128xf32>
    tpu.vector_store %arg10[%c0_25, %c0_26], %30 {strides = array<i32>} : memref<2x128xf32, #tpu.memory_space<vmem>>, vector<2x128xf32>,
    return
  }
  func.func @transform_0(%arg0: i32) -> (i32, i32) {
    %c0_i32 = arith.constant 0 : i32
    %c0_i32_0 = arith.constant 0 : i32
    return %arg0, %c0_i32 : i32, i32
  }
  func.func @transform_1(%arg0: i32) -> (i32, i32) {
    %c0_i32 = arith.constant 0 : i32
    %c0_i32_0 = arith.constant 0 : i32
    %c0_i32_1 = arith.constant 0 : i32
    return %c0_i32, %c0_i32_0 : i32, i32
  }
  func.func @transform_2(%arg0: i32) -> (i32, i32) {
    %c0_i32 = arith.constant 0 : i32
    %c0_i32_0 = arith.constant 0 : i32
    %c0_i32_1 = arith.constant 0 : i32
    return %c0_i32, %c0_i32_0 : i32, i32
  }
  func.func @transform_3(%arg0: i32) -> (i32, i32) {
    %c0_i32 = arith.constant 0 : i32
    %c0_i32_0 = arith.constant 0 : i32
    %c0_i32_1 = arith.constant 0 : i32
    return %c0_i32, %c0_i32_0 : i32, i32
  }
  func.func @transform_4(%arg0: i32) -> (i32, i32) {
    %c0_i32 = arith.constant 0 : i32
    %c0_i32_0 = arith.constant 0 : i32
    %c0_i32_1 = arith.constant 0 : i32
    return %c0_i32, %c0_i32_0 : i32, i32
  }
  func.func @transform_5(%arg0: i32) -> (i32, i32) {
    %c0_i32 = arith.constant 0 : i32
    %c0_i32_0 = arith.constant 0 : i32
    %c0_i32_1 = arith.constant 0 : i32
    return %c0_i32, %c0_i32_0 : i32, i32
  }
  func.func @transform_6(%arg0: i32) -> (i32, i32) {
    %c0_i32 = arith.constant 0 : i32
    %c0_i32_0 = arith.constant 0 : i32
    %c0_i32_1 = arith.constant 0 : i32
    return %c0_i32, %c0_i32_0 : i32, i32
  }
  func.func @transform_7(%arg0: i32) -> (i32, i32) {
    %c0_i32 = arith.constant 0 : i32
    %c0_i32_0 = arith.constant 0 : i32
    %c0_i32_1 = arith.constant 0 : i32
    return %c0_i32, %c0_i32_0 : i32, i32
  }
  func.func @transform_8(%arg0: i32) -> (i32, i32) {
    %c0_i32 = arith.constant 0 : i32
    %c0_i32_0 = arith.constant 0 : i32
    %c0_i32_1 = arith.constant 0 : i32
    return %c0_i32, %c0_i32_0 : i32, i32
  }
  func.func @transform_9(%arg0: i32) -> (i32, i32) {
    %c0_i32 = arith.constant 0 : i32
    %c0_i32_0 = arith.constant 0 : i32
    return %arg0, %c0_i32 : i32, i32
  }
}

</mosaic_0001>

<llo_original>
// kernel: single_source_net_forward.1
$region0: #{single_source_net_forward.1}
  #allocation0 [shape = 'u32[]', space=smem, size = 0x4, offset = 0x4, fixed_abs, tag = 'smem constant byte address 0x4 - core index']
  #allocation1 [shape = 'u32[144,128]{1,0:T(1,128)}', space=vmem, size = 0x12000, scoped, tag = 'internal scratch']
  %s0 = inlined_call_operand.vmem [shape: f32[512,128], index: 0, kind: input, shape index: {}]
  %s1 = inlined_call_operand.vmem [shape: f32[128,32], index: 1, kind: input, shape index: {}]
  %s2 = inlined_call_operand.vmem [shape: f32[1,32], index: 2, kind: input, shape index: {}]
  %s3 = inlined_call_operand.vmem [shape: f32[32,16], index: 3, kind: input, shape index: {}]
  %s4 = inlined_call_operand.vmem [shape: f32[1,16], index: 4, kind: input, shape index: {}]
  %s5 = inlined_call_operand.vmem [shape: f32[16,16], index: 5, kind: input, shape index: {}]
  %s6 = inlined_call_operand.vmem [shape: f32[1,16], index: 6, kind: input, shape index: {}]
  %s7 = inlined_call_operand.vmem [shape: f32[16,128], index: 7, kind: input, shape index: {}]
  %s8 = inlined_call_operand.vmem [shape: f32[1,128], index: 8, kind: input, shape index: {}]
  %s9 = inlined_call_operand.hbm [shape: f32[2,128], index: 9, kind: output, shape index: {}]
  %s10 = sld [smem:[#allocation0]]
  $region46: #{single_source_net_forward.1} parent=0
    _
  %s12 = ssub.s32 1, %s10
  %s13 = scalar_select 0, %s12, %s10
  $region1: #{single_source_net_forward.1} parent=0
    #allocation2 [shape = 'u8[1024]{0}', space=vmem, size = 0x400, scoped, tag = 'output window, operand 0, single buffered']
    #allocation3 [shape = 's32[1]{0}', space=sflag, size = 0x4, scoped, tag = 'scoped memory for single_source_net_forward.1']
    %14 = vsyncpa [#allocation3], 0
    // Predicated region
    $region2: #{single_source_net_forward.1} parent=1 // pred_check
      _
    $region3: #{single_source_net_forward.1} parent=1 // pred_check_branch
      %16 = sbr.rel (0) target = $region5
    $region4: #{single_source_net_forward.1} parent=1 // pred_region
      _
    $region5: #{single_source_net_forward.1} parent=1 // pred_fallthru
      _
    // Predicated region
    $region6: #{single_source_net_forward.1} parent=1 // pred_check
      _
    $region7: #{single_source_net_forward.1} parent=1 // pred_check_branch
      %18 = sbr.rel (0) target = $region9
    $region8: #{single_source_net_forward.1} parent=1 // pred_region
      _
    $region9: #{single_source_net_forward.1} parent=1 // pred_fallthru
      _
    // Predicated region
    $region10: #{single_source_net_forward.1} parent=1 // pred_check
      _
    $region11: #{single_source_net_forward.1} parent=1 // pred_check_branch
      %20 = sbr.rel (0) target = $region13
    $region12: #{single_source_net_forward.1} parent=1 // pred_region
      _
    $region13: #{single_source_net_forward.1} parent=1 // pred_fallthru
      _
    // Predicated region
    $region14: #{single_source_net_forward.1} parent=1 // pred_check
      _
    $region15: #{single_source_net_forward.1} parent=1 // pred_check_branch
      %22 = sbr.rel (0) target = $region17
    $region16: #{single_source_net_forward.1} parent=1 // pred_region
      _
    $region17: #{single_source_net_forward.1} parent=1 // pred_fallthru
      _
    // Predicated region
    $region18: #{single_source_net_forward.1} parent=1 // pred_check
      _
    $region19: #{single_source_net_forward.1} parent=1 // pred_check_branch
      %24 = sbr.rel (0) target = $region21
    $region20: #{single_source_net_forward.1} parent=1 // pred_region
      _
    $region21: #{single_source_net_forward.1} parent=1 // pred_fallthru
      _
    // Predicated region
    $region22: #{single_source_net_forward.1} parent=1 // pred_check
      _
    $region23: #{single_source_net_forward.1} parent=1 // pred_check_branch
      %26 = sbr.rel (0) target = $region25
    $region24: #{single_source_net_forward.1} parent=1 // pred_region
      _
    $region25: #{single_source_net_forward.1} parent=1 // pred_fallthru
      _
    // Predicated region
    $region26: #{single_source_net_forward.1} parent=1 // pred_check
      _
    $region27: #{single_source_net_forward.1} parent=1 // pred_check_branch
      %28 = sbr.rel (0) target = $region29
    $region28: #{single_source_net_forward.1} parent=1 // pred_region
      _
    $region29: #{single_source_net_forward.1} parent=1 // pred_fallthru
      _
    // Predicated region
    $region30: #{single_source_net_forward.1} parent=1 // pred_check
      _
    $region31: #{single_source_net_forward.1} parent=1 // pred_check_branch
      %30 = sbr.rel (0) target = $region33
    $region32: #{single_source_net_forward.1} parent=1 // pred_region
      _
    $region33: #{single_source_net_forward.1} parent=1 // pred_fallthru
      _
    // Predicated region
    $region34: #{single_source_net_forward.1} parent=1 // pred_check
      _
    $region35: #{single_source_net_forward.1} parent=1 // pred_check_branch
      %32 = sbr.rel (0) target = $region37
    $region36: #{single_source_net_forward.1} parent=1 // pred_region
      _
    $region37: #{single_source_net_forward.1} parent=1 // pred_fallthru
      _
    %v33 = vld [vmem:[%s0] sm:$0xff]
    %v34 = vld [vmem:[%s0 + $0x8] sm:$0xff]
    %v35 = vld [vmem:[%s0 + $0x10] sm:$0xff]
    %v36 = vld [vmem:[%s0 + $0x18] sm:$0xff]
    %v37 = vld [vmem:[%s0 + $0x20] sm:$0xff]
    %v38 = vld [vmem:[%s0 + $0x28] sm:$0xff]
    %v39 = vld [vmem:[%s0 + $0x30] sm:$0xff]
    %v40 = vld [vmem:[%s0 + $0x38] sm:$0xff]
    %v41 = vld [vmem:[%s0 + $0x40] sm:$0xff]
    %v42 = vld [vmem:[%s0 + $0x48] sm:$0xff]
    %v43 = vld [vmem:[%s0 + $0x50] sm:$0xff]
    %v44 = vld [vmem:[%s0 + $0x58] sm:$0xff]
    %v45 = vld [vmem:[%s0 + $0x60] sm:$0xff]
    %v46 = vld [vmem:[%s0 + $0x68] sm:$0xff]
    %v47 = vld [vmem:[%s0 + $0x70] sm:$0xff]
    %v48 = vld [vmem:[%s0 + $0x78] sm:$0xff]
    %v49 = vld [vmem:[%s0 + $0x80] sm:$0xff]
    %v50 = vld [vmem:[%s0 + $0x88] sm:$0xff]
    %v51 = vld [vmem:[%s0 + $0x90] sm:$0xff]
    %v52 = vld [vmem:[%s0 + $0x98] sm:$0xff]
    %v53 = vld [vmem:[%s0 + $0xa0] sm:$0xff]
    %v54 = vld [vmem:[%s0 + $0xa8] sm:$0xff]
    %v55 = vld [vmem:[%s0 + $0xb0] sm:$0xff]
    %v56 = vld [vmem:[%s0 + $0xb8] sm:$0xff]
    %v57 = vld [vmem:[%s0 + $0xc0] sm:$0xff]
    %v58 = vld [vmem:[%s0 + $0xc8] sm:$0xff]
    %v59 = vld [vmem:[%s0 + $0xd0] sm:$0xff]
    %v60 = vld [vmem:[%s0 + $0xd8] sm:$0xff]
    %v61 = vld [vmem:[%s0 + $0xe0] sm:$0xff]
    %v62 = vld [vmem:[%s0 + $0xe8] sm:$0xff]
    %v63 = vld [vmem:[%s0 + $0xf0] sm:$0xff]
    %v64 = vld [vmem:[%s0 + $0xf8] sm:$0xff]
    %v65 = vld [vmem:[%s0 + $0x100] sm:$0xff]
    %v66 = vld [vmem:[%s0 + $0x108] sm:$0xff]
    %v67 = vld [vmem:[%s0 + $0x110] sm:$0xff]
    %v68 = vld [vmem:[%s0 + $0x118] sm:$0xff]
    %v69 = vld [vmem:[%s0 + $0x120] sm:$0xff]
    %v70 = vld [vmem:[%s0 + $0x128] sm:$0xff]
    %v71 = vld [vmem:[%s0 + $0x130] sm:$0xff]
    %v72 = vld [vmem:[%s0 + $0x138] sm:$0xff]
    %v73 = vld [vmem:[%s0 + $0x140] sm:$0xff]
    %v74 = vld [vmem:[%s0 + $0x148] sm:$0xff]
    %v75 = vld [vmem:[%s0 + $0x150] sm:$0xff]
    %v76 = vld [vmem:[%s0 + $0x158] sm:$0xff]
    %v77 = vld [vmem:[%s0 + $0x160] sm:$0xff]
    %v78 = vld [vmem:[%s0 + $0x168] sm:$0xff]
    %v79 = vld [vmem:[%s0 + $0x170] sm:$0xff]
    %v80 = vld [vmem:[%s0 + $0x178] sm:$0xff]
    %v81 = vld [vmem:[%s0 + $0x180] sm:$0xff]
    %v82 = vld [vmem:[%s0 + $0x188] sm:$0xff]
    %v83 = vld [vmem:[%s0 + $0x190] sm:$0xff]
    %v84 = vld [vmem:[%s0 + $0x198] sm:$0xff]
    %v85 = vld [vmem:[%s0 + $0x1a0] sm:$0xff]
    %v86 = vld [vmem:[%s0 + $0x1a8] sm:$0xff]
    %v87 = vld [vmem:[%s0 + $0x1b0] sm:$0xff]
    %v88 = vld [vmem:[%s0 + $0x1b8] sm:$0xff]
    %v89 = vld [vmem:[%s0 + $0x1c0] sm:$0xff]
    %v90 = vld [vmem:[%s0 + $0x1c8] sm:$0xff]
    %v91 = vld [vmem:[%s0 + $0x1d0] sm:$0xff]
    %v92 = vld [vmem:[%s0 + $0x1d8] sm:$0xff]
    %v93 = vld [vmem:[%s0 + $0x1e0] sm:$0xff]
    %v94 = vld [vmem:[%s0 + $0x1e8] sm:$0xff]
    %v95 = vld [vmem:[%s0 + $0x1f0] sm:$0xff]
    %v96 = vld [vmem:[%s0 + $0x1f8] sm:$0xff]
    %v97 = vld [vmem:[%s1] sm:$0xff]
    %v98 = vld [vmem:[%s1 + $0x8] sm:$0xff]
    %v99 = vld [vmem:[%s1 + $0x10] sm:$0xff]
    %v100 = vld [vmem:[%s1 + $0x18] sm:$0xff]
    %v101 = vld [vmem:[%s1 + $0x20] sm:$0xff]
    %v102 = vld [vmem:[%s1 + $0x28] sm:$0xff]
    %v103 = vld [vmem:[%s1 + $0x30] sm:$0xff]
    %v104 = vld [vmem:[%s1 + $0x38] sm:$0xff]
    %v105 = vld [vmem:[%s1 + $0x40] sm:$0xff]
    %v106 = vld [vmem:[%s1 + $0x48] sm:$0xff]
    %v107 = vld [vmem:[%s1 + $0x50] sm:$0xff]
    %v108 = vld [vmem:[%s1 + $0x58] sm:$0xff]
    %v109 = vld [vmem:[%s1 + $0x60] sm:$0xff]
    %v110 = vld [vmem:[%s1 + $0x68] sm:$0xff]
    %v111 = vld [vmem:[%s1 + $0x70] sm:$0xff]
    %v112 = vld [vmem:[%s1 + $0x78] sm:$0xff]
    %v113 = vld [vmem:[%s2] sm:$0x1]
    %v115 = vlaneseq
    %v116 = vshrl.u32 %v115, 7
    %v117 = vsub.s32 0, %v116
    %v118 = vrot.slane %v113, %v117
    %120 = vmatprep.subr.mxu0 0.0
    %121 = vmatpush1.msra.mxu0 %v97
    %122 = vmatprep.subr.mxu0 0.0
    %123 = vmatpush1.msra.mxu0 %v98
    %124 = vmatprep.subr.mxu0 0.0
    %125 = vmatpush1.msra.mxu0 %v99
    %126 = vmatprep.subr.mxu0 0.0
    %127 = vmatpush1.msra.mxu0 %v100
    %128 = vmatprep.subr.mxu0 0.0
    %129 = vmatpush1.msra.mxu0 %v101
    %130 = vmatprep.subr.mxu0 0.0
    %131 = vmatpush1.msra.mxu0 %v102
    %132 = vmatprep.subr.mxu0 0.0
    %133 = vmatpush1.msra.mxu0 %v103
    %134 = vmatprep.subr.mxu0 0.0
    %135 = vmatpush1.msra.mxu0 %v104
    %136 = vmatprep.subr.mxu0 0.0
    %137 = vmatpush1.msra.mxu0 %v105
    %138 = vmatprep.subr.mxu0 0.0
    %139 = vmatpush1.msra.mxu0 %v106
    %140 = vmatprep.subr.mxu0 0.0
    %141 = vmatpush1.msra.mxu0 %v107
    %142 = vmatprep.subr.mxu0 0.0
    %143 = vmatpush1.msra.mxu0 %v108
    %144 = vmatprep.subr.mxu0 0.0
    %145 = vmatpush1.msra.mxu0 %v109
    %146 = vmatprep.subr.mxu0 0.0
    %147 = vmatpush1.msra.mxu0 %v110
    %148 = vmatprep.subr.mxu0 0.0
    %149 = vmatpush1.msra.mxu0 %v111
    %150 = vmatprep.subr.mxu0 0.0
    %151 = vmatpush1.msra.mxu0 %v112
    %152 = vmatprep.subr.mxu0 0.0
    %153 = vmatpush1.msra.mxu0 0.0
    %154 = vmatprep.subr.mxu0 0.0
    %155 = vmatpush1.msra.mxu0 0.0
    %156 = vmatprep.subr.mxu0 0.0
    %157 = vmatpush1.msra.mxu0 0.0
    %158 = vmatprep.subr.mxu0 0.0
    %159 = vmatpush1.msra.mxu0 0.0
    %160 = vmatprep.subr.mxu0 0.0
    %161 = vmatpush1.msra.mxu0 0.0
    %162 = vmatprep.subr.mxu0 0.0
    %163 = vmatpush1.msra.mxu0 0.0
    %164 = vmatprep.subr.mxu0 0.0
    %165 = vmatpush1.msra.mxu0 0.0
    %166 = vmatprep.subr.mxu0 0.0
    %167 = vmatpush1.msra.mxu0 0.0
    %168 = vmatprep.subr.mxu0 0.0
    %169 = vmatpush1.msra.mxu0 0.0
    %170 = vmatprep.subr.mxu0 0.0
    %171 = vmatpush1.msra.mxu0 0.0
    %172 = vmatprep.subr.mxu0 0.0
    %173 = vmatpush1.msra.mxu0 0.0
    %174 = vmatprep.subr.mxu0 0.0
    %175 = vmatpush1.msra.mxu0 0.0
    %176 = vmatprep.subr.mxu0 0.0
    %177 = vmatpush1.msra.mxu0 0.0
    %178 = vmatprep.subr.mxu0 0.0
    %179 = vmatpush1.msra.mxu0 0.0
    %180 = vmatprep.subr.mxu0 0.0
    %181 = vmatpush1.msra.mxu0 0.0
    %182 = vmatprep.subr.mxu0 0.0
    %183 = vmatpush1.msra.mxu0 0.0
    %184 = vmatprep.mubr.f32.mxu0 0.0
    %185 = vmatmul.mubr.f32.gmra.mrb[0].mxu0 %v33
    %v186 = vpop.f32.mrb[0].mxu0
    %v187 = vadd.f32 %v118, %v186
    %v188 = vpop.f32.mrb[0].mxu0
    %189 = vmatprep.mubr.f32.mxu0 0.0
    %190 = vmatmul.mubr.f32.gmra.mrb[0].mxu0 %v34
    %v191 = vpop.f32.mrb[0].mxu0
    %v192 = vadd.f32 %v118, %v191
    %v193 = vpop.f32.mrb[0].mxu0
    %194 = vmatprep.mubr.f32.mxu0 0.0
    %195 = vmatmul.mubr.f32.gmra.mrb[0].mxu0 %v35
    %v196 = vpop.f32.mrb[0].mxu0
    %v197 = vadd.f32 %v118, %v196
    %v198 = vpop.f32.mrb[0].mxu0
    %199 = vmatprep.mubr.f32.mxu0 0.0
    %200 = vmatmul.mubr.f32.gmra.mrb[0].mxu0 %v36
    %v201 = vpop.f32.mrb[0].mxu0
    %v202 = vadd.f32 %v118, %v201
    %v203 = vpop.f32.mrb[0].mxu0
    %204 = vmatprep.mubr.f32.mxu0 0.0
    %205 = vmatmul.mubr.f32.gmra.mrb[0].mxu0 %v37
    %v206 = vpop.f32.mrb[0].mxu0
    %v207 = vadd.f32 %v118, %v206
    %v208 = vpop.f32.mrb[0].mxu0
    %209 = vmatprep.mubr.f32.mxu0 0.0
    %210 = vmatmul.mubr.f32.gmra.mrb[0].mxu0 %v38
    %v211 = vpop.f32.mrb[0].mxu0
    %v212 = vadd.f32 %v118, %v211
    %v213 = vpop.f32.mrb[0].mxu0
    %214 = vmatprep.mubr.f32.mxu0 0.0
    %215 = vmatmul.mubr.f32.gmra.mrb[0].mxu0 %v39
    %v216 = vpop.f32.mrb[0].mxu0
    %v217 = vadd.f32 %v118, %v216
    %v218 = vpop.f32.mrb[0].mxu0
    %219 = vmatprep.mubr.f32.mxu0 0.0
    %220 = vmatmul.mubr.f32.gmra.mrb[0].mxu0 %v40
    %v221 = vpop.f32.mrb[0].mxu0
    %v222 = vadd.f32 %v118, %v221
    %v223 = vpop.f32.mrb[0].mxu0
    %224 = vmatprep.mubr.f32.mxu0 0.0
    %225 = vmatmul.mubr.f32.gmra.mrb[0].mxu0 %v41
    %v226 = vpop.f32.mrb[0].mxu0
    %v227 = vadd.f32 %v118, %v226
    %v228 = vpop.f32.mrb[0].mxu0
    %229 = vmatprep.mubr.f32.mxu0 0.0
    %230 = vmatmul.mubr.f32.gmra.mrb[0].mxu0 %v42
    %v231 = vpop.f32.mrb[0].mxu0
    %v232 = vadd.f32 %v118, %v231
    %v233 = vpop.f32.mrb[0].mxu0
    %234 = vmatprep.mubr.f32.mxu0 0.0
    %235 = vmatmul.mubr.f32.gmra.mrb[0].mxu0 %v43
    %v236 = vpop.f32.mrb[0].mxu0
    %v237 = vadd.f32 %v118, %v236
    %v238 = vpop.f32.mrb[0].mxu0
    %239 = vmatprep.mubr.f32.mxu0 0.0
    %240 = vmatmul.mubr.f32.gmra.mrb[0].mxu0 %v44
    %v241 = vpop.f32.mrb[0].mxu0
    %v242 = vadd.f32 %v118, %v241
    %v243 = vpop.f32.mrb[0].mxu0
    %244 = vmatprep.mubr.f32.mxu0 0.0
    %245 = vmatmul.mubr.f32.gmra.mrb[0].mxu0 %v45
    %v246 = vpop.f32.mrb[0].mxu0
    %v247 = vadd.f32 %v118, %v246
    %v248 = vpop.f32.mrb[0].mxu0
    %249 = vmatprep.mubr.f32.mxu0 0.0
    %250 = vmatmul.mubr.f32.gmra.mrb[0].mxu0 %v46
    %v251 = vpop.f32.mrb[0].mxu0
    %v252 = vadd.f32 %v118, %v251
    %v253 = vpop.f32.mrb[0].mxu0
    %254 = vmatprep.mubr.f32.mxu0 0.0
    %255 = vmatmul.mubr.f32.gmra.mrb[0].mxu0 %v47
    %v256 = vpop.f32.mrb[0].mxu0
    %v257 = vadd.f32 %v118, %v256
    %v258 = vpop.f32.mrb[0].mxu0
    %259 = vmatprep.mubr.f32.mxu0 0.0
    %260 = vmatmul.mubr.f32.gmra.mrb[0].mxu0 %v48
    %v261 = vpop.f32.mrb[0].mxu0
    %v262 = vadd.f32 %v118, %v261
    %v263 = vpop.f32.mrb[0].mxu0
    %264 = vmatprep.mubr.f32.mxu0 0.0
    %265 = vmatmul.mubr.f32.gmra.mrb[0].mxu0 %v49
    %v266 = vpop.f32.mrb[0].mxu0
    %v267 = vadd.f32 %v118, %v266
    %v268 = vpop.f32.mrb[0].mxu0
    %269 = vmatprep.mubr.f32.mxu0 0.0
    %270 = vmatmul.mubr.f32.gmra.mrb[0].mxu0 %v50
    %v271 = vpop.f32.mrb[0].mxu0
    %v272 = vadd.f32 %v118, %v271
    %v273 = vpop.f32.mrb[0].mxu0
    %274 = vmatprep.mubr.f32.mxu0 0.0
    %275 = vmatmul.mubr.f32.gmra.mrb[0].mxu0 %v51
    %v276 = vpop.f32.mrb[0].mxu0
    %v277 = vadd.f32 %v118, %v276
    %v278 = vpop.f32.mrb[0].mxu0
    %279 = vmatprep.mubr.f32.mxu0 0.0
    %280 = vmatmul.mubr.f32.gmra.mrb[0].mxu0 %v52
    %v281 = vpop.f32.mrb[0].mxu0
    %v282 = vadd.f32 %v118, %v281
    %v283 = vpop.f32.mrb[0].mxu0
    %284 = vmatprep.mubr.f32.mxu0 0.0
    %285 = vmatmul.mubr.f32.gmra.mrb[0].mxu0 %v53
    %v286 = vpop.f32.mrb[0].mxu0
    %v287 = vadd.f32 %v118, %v286
    %v288 = vpop.f32.mrb[0].mxu0
    %289 = vmatprep.mubr.f32.mxu0 0.0
    %290 = vmatmul.mubr.f32.gmra.mrb[0].mxu0 %v54
    %v291 = vpop.f32.mrb[0].mxu0
    %v292 = vadd.f32 %v118, %v291
    %v293 = vpop.f32.mrb[0].mxu0
    %294 = vmatprep.mubr.f32.mxu0 0.0
    %295 = vmatmul.mubr.f32.gmra.mrb[0].mxu0 %v55
    %v296 = vpop.f32.mrb[0].mxu0
    %v297 = vadd.f32 %v118, %v296
    %v298 = vpop.f32.mrb[0].mxu0
    %299 = vmatprep.mubr.f32.mxu0 0.0
    %300 = vmatmul.mubr.f32.gmra.mrb[0].mxu0 %v56
    %v301 = vpop.f32.mrb[0].mxu0
    %v302 = vadd.f32 %v118, %v301
    %v303 = vpop.f32.mrb[0].mxu0
    %304 = vmatprep.mubr.f32.mxu0 0.0
    %305 = vmatmul.mubr.f32.gmra.mrb[0].mxu0 %v57
    %v306 = vpop.f32.mrb[0].mxu0
    %v307 = vadd.f32 %v118, %v306
    %v308 = vpop.f32.mrb[0].mxu0
    %309 = vmatprep.mubr.f32.mxu0 0.0
    %310 = vmatmul.mubr.f32.gmra.mrb[0].mxu0 %v58
    %v311 = vpop.f32.mrb[0].mxu0
    %v312 = vadd.f32 %v118, %v311
    %v313 = vpop.f32.mrb[0].mxu0
    %314 = vmatprep.mubr.f32.mxu0 0.0
    %315 = vmatmul.mubr.f32.gmra.mrb[0].mxu0 %v59
    %v316 = vpop.f32.mrb[0].mxu0
    %v317 = vadd.f32 %v118, %v316
    %v318 = vpop.f32.mrb[0].mxu0
    %319 = vmatprep.mubr.f32.mxu0 0.0
    %320 = vmatmul.mubr.f32.gmra.mrb[0].mxu0 %v60
    %v321 = vpop.f32.mrb[0].mxu0
    %v322 = vadd.f32 %v118, %v321
    %v323 = vpop.f32.mrb[0].mxu0
    %324 = vmatprep.mubr.f32.mxu0 0.0
    %325 = vmatmul.mubr.f32.gmra.mrb[0].mxu0 %v61
    %v326 = vpop.f32.mrb[0].mxu0
    %v327 = vadd.f32 %v118, %v326
    %v328 = vpop.f32.mrb[0].mxu0
    %329 = vmatprep.mubr.f32.mxu0 0.0
    %330 = vmatmul.mubr.f32.gmra.mrb[0].mxu0 %v62
    %v331 = vpop.f32.mrb[0].mxu0
    %v332 = vadd.f32 %v118, %v331
    %v333 = vpop.f32.mrb[0].mxu0
    %334 = vmatprep.mubr.f32.mxu0 0.0
    %335 = vmatmul.mubr.f32.gmra.mrb[0].mxu0 %v63
    %v336 = vpop.f32.mrb[0].mxu0
    %v337 = vadd.f32 %v118, %v336
    %v338 = vpop.f32.mrb[0].mxu0
    %339 = vmatprep.mubr.f32.mxu0 0.0
    %340 = vmatmul.mubr.f32.gmra.mrb[0].mxu0 %v64
    %v341 = vpop.f32.mrb[0].mxu0
    %v342 = vadd.f32 %v118, %v341
    %v343 = vpop.f32.mrb[0].mxu0
    %344 = vmatprep.mubr.f32.mxu0 0.0
    %345 = vmatmul.mubr.f32.gmra.mrb[0].mxu0 %v65
    %v346 = vpop.f32.mrb[0].mxu0
    %v347 = vadd.f32 %v118, %v346
    %v348 = vpop.f32.mrb[0].mxu0
    %349 = vmatprep.mubr.f32.mxu0 0.0
    %350 = vmatmul.mubr.f32.gmra.mrb[0].mxu0 %v66
    %v351 = vpop.f32.mrb[0].mxu0
    %v352 = vadd.f32 %v118, %v351
    %v353 = vpop.f32.mrb[0].mxu0
    %354 = vmatprep.mubr.f32.mxu0 0.0
    %355 = vmatmul.mubr.f32.gmra.mrb[0].mxu0 %v67
    %v356 = vpop.f32.mrb[0].mxu0
    %v357 = vadd.f32 %v118, %v356
    %v358 = vpop.f32.mrb[0].mxu0
    %359 = vmatprep.mubr.f32.mxu0 0.0
    %360 = vmatmul.mubr.f32.gmra.mrb[0].mxu0 %v68
    %v361 = vpop.f32.mrb[0].mxu0
    %v362 = vadd.f32 %v118, %v361
    %v363 = vpop.f32.mrb[0].mxu0
    %364 = vmatprep.mubr.f32.mxu0 0.0
    %365 = vmatmul.mubr.f32.gmra.mrb[0].mxu0 %v69
    %v366 = vpop.f32.mrb[0].mxu0
    %v367 = vadd.f32 %v118, %v366
    %v368 = vpop.f32.mrb[0].mxu0
    %369 = vmatprep.mubr.f32.mxu0 0.0
    %370 = vmatmul.mubr.f32.gmra.mrb[0].mxu0 %v70
    %v371 = vpop.f32.mrb[0].mxu0
    %v372 = vadd.f32 %v118, %v371
    %v373 = vpop.f32.mrb[0].mxu0
    %374 = vmatprep.mubr.f32.mxu0 0.0
    %375 = vmatmul.mubr.f32.gmra.mrb[0].mxu0 %v71
    %v376 = vpop.f32.mrb[0].mxu0
    %v377 = vadd.f32 %v118, %v376
    %v378 = vpop.f32.mrb[0].mxu0
    %379 = vmatprep.mubr.f32.mxu0 0.0
    %380 = vmatmul.mubr.f32.gmra.mrb[0].mxu0 %v72
    %v381 = vpop.f32.mrb[0].mxu0
    %v382 = vadd.f32 %v118, %v381
    %v383 = vpop.f32.mrb[0].mxu0
    %384 = vmatprep.mubr.f32.mxu0 0.0
    %385 = vmatmul.mubr.f32.gmra.mrb[0].mxu0 %v73
    %v386 = vpop.f32.mrb[0].mxu0
    %v387 = vadd.f32 %v118, %v386
    %v388 = vpop.f32.mrb[0].mxu0
    %389 = vmatprep.mubr.f32.mxu0 0.0
    %390 = vmatmul.mubr.f32.gmra.mrb[0].mxu0 %v74
    %v391 = vpop.f32.mrb[0].mxu0
    %v392 = vadd.f32 %v118, %v391
    %v393 = vpop.f32.mrb[0].mxu0
    %394 = vmatprep.mubr.f32.mxu0 0.0
    %395 = vmatmul.mubr.f32.gmra.mrb[0].mxu0 %v75
    %v396 = vpop.f32.mrb[0].mxu0
    %v397 = vadd.f32 %v118, %v396
    %v398 = vpop.f32.mrb[0].mxu0
    %399 = vmatprep.mubr.f32.mxu0 0.0
    %400 = vmatmul.mubr.f32.gmra.mrb[0].mxu0 %v76
    %v401 = vpop.f32.mrb[0].mxu0
    %v402 = vadd.f32 %v118, %v401
    %v403 = vpop.f32.mrb[0].mxu0
    %404 = vmatprep.mubr.f32.mxu0 0.0
    %405 = vmatmul.mubr.f32.gmra.mrb[0].mxu0 %v77
    %v406 = vpop.f32.mrb[0].mxu0
    %v407 = vadd.f32 %v118, %v406
    %v408 = vpop.f32.mrb[0].mxu0
    %409 = vmatprep.mubr.f32.mxu0 0.0
    %410 = vmatmul.mubr.f32.gmra.mrb[0].mxu0 %v78
    %v411 = vpop.f32.mrb[0].mxu0
    %v412 = vadd.f32 %v118, %v411
    %v413 = vpop.f32.mrb[0].mxu0
    %414 = vmatprep.mubr.f32.mxu0 0.0
    %415 = vmatmul.mubr.f32.gmra.mrb[0].mxu0 %v79
    %v416 = vpop.f32.mrb[0].mxu0
    %v417 = vadd.f32 %v118, %v416
    %v418 = vpop.f32.mrb[0].mxu0
    %419 = vmatprep.mubr.f32.mxu0 0.0
    %420 = vmatmul.mubr.f32.gmra.mrb[0].mxu0 %v80
    %v421 = vpop.f32.mrb[0].mxu0
    %v422 = vadd.f32 %v118, %v421
    %v423 = vpop.f32.mrb[0].mxu0
    %424 = vmatprep.mubr.f32.mxu0 0.0
    %425 = vmatmul.mubr.f32.gmra.mrb[0].mxu0 %v81
    %v426 = vpop.f32.mrb[0].mxu0
    %v427 = vadd.f32 %v118, %v426
    %v428 = vpop.f32.mrb[0].mxu0
    %429 = vmatprep.mubr.f32.mxu0 0.0
    %430 = vmatmul.mubr.f32.gmra.mrb[0].mxu0 %v82
    %v431 = vpop.f32.mrb[0].mxu0
    %v432 = vadd.f32 %v118, %v431
    %v433 = vpop.f32.mrb[0].mxu0
    %434 = vmatprep.mubr.f32.mxu0 0.0
    %435 = vmatmul.mubr.f32.gmra.mrb[0].mxu0 %v83
    %v436 = vpop.f32.mrb[0].mxu0
    %v437 = vadd.f32 %v118, %v436
    %v438 = vpop.f32.mrb[0].mxu0
    %439 = vmatprep.mubr.f32.mxu0 0.0
    %440 = vmatmul.mubr.f32.gmra.mrb[0].mxu0 %v84
    %v441 = vpop.f32.mrb[0].mxu0
    %v442 = vadd.f32 %v118, %v441
    %v443 = vpop.f32.mrb[0].mxu0
    %444 = vmatprep.mubr.f32.mxu0 0.0
    %445 = vmatmul.mubr.f32.gmra.mrb[0].mxu0 %v85
    %v446 = vpop.f32.mrb[0].mxu0
    %v447 = vadd.f32 %v118, %v446
    %v448 = vpop.f32.mrb[0].mxu0
    %449 = vmatprep.mubr.f32.mxu0 0.0
    %450 = vmatmul.mubr.f32.gmra.mrb[0].mxu0 %v86
    %v451 = vpop.f32.mrb[0].mxu0
    %v452 = vadd.f32 %v118, %v451
    %v453 = vpop.f32.mrb[0].mxu0
    %454 = vmatprep.mubr.f32.mxu0 0.0
    %455 = vmatmul.mubr.f32.gmra.mrb[0].mxu0 %v87
    %v456 = vpop.f32.mrb[0].mxu0
    %v457 = vadd.f32 %v118, %v456
    %v458 = vpop.f32.mrb[0].mxu0
    %459 = vmatprep.mubr.f32.mxu0 0.0
    %460 = vmatmul.mubr.f32.gmra.mrb[0].mxu0 %v88
    %v461 = vpop.f32.mrb[0].mxu0
    %v462 = vadd.f32 %v118, %v461
    %v463 = vpop.f32.mrb[0].mxu0
    %464 = vmatprep.mubr.f32.mxu0 0.0
    %465 = vmatmul.mubr.f32.gmra.mrb[0].mxu0 %v89
    %v466 = vpop.f32.mrb[0].mxu0
    %v467 = vadd.f32 %v118, %v466
    %v468 = vpop.f32.mrb[0].mxu0
    %469 = vmatprep.mubr.f32.mxu0 0.0
    %470 = vmatmul.mubr.f32.gmra.mrb[0].mxu0 %v90
    %v471 = vpop.f32.mrb[0].mxu0
    %v472 = vadd.f32 %v118, %v471
    %v473 = vpop.f32.mrb[0].mxu0
    %474 = vmatprep.mubr.f32.mxu0 0.0
    %475 = vmatmul.mubr.f32.gmra.mrb[0].mxu0 %v91
    %v476 = vpop.f32.mrb[0].mxu0
    %v477 = vadd.f32 %v118, %v476
    %v478 = vpop.f32.mrb[0].mxu0
    %479 = vmatprep.mubr.f32.mxu0 0.0
    %480 = vmatmul.mubr.f32.gmra.mrb[0].mxu0 %v92
    %v481 = vpop.f32.mrb[0].mxu0
    %v482 = vadd.f32 %v118, %v481
    %v483 = vpop.f32.mrb[0].mxu0
    %484 = vmatprep.mubr.f32.mxu0 0.0
    %485 = vmatmul.mubr.f32.gmra.mrb[0].mxu0 %v93
    %v486 = vpop.f32.mrb[0].mxu0
    %v487 = vadd.f32 %v118, %v486
    %v488 = vpop.f32.mrb[0].mxu0
    %489 = vmatprep.mubr.f32.mxu0 0.0
    %490 = vmatmul.mubr.f32.gmra.mrb[0].mxu0 %v94
    %v491 = vpop.f32.mrb[0].mxu0
    %v492 = vadd.f32 %v118, %v491
    %v493 = vpop.f32.mrb[0].mxu0
    %494 = vmatprep.mubr.f32.mxu0 0.0
    %495 = vmatmul.mubr.f32.gmra.mrb[0].mxu0 %v95
    %v496 = vpop.f32.mrb[0].mxu0
    %v497 = vadd.f32 %v118, %v496
    %v498 = vpop.f32.mrb[0].mxu0
    %499 = vmatprep.mubr.f32.mxu0 0.0
    %500 = vmatmul.mubr.f32.gmra.mrb[0].mxu0 %v96
    %v501 = vpop.f32.mrb[0].mxu0
    %v502 = vadd.f32 %v118, %v501
    %v503 = vpop.f32.mrb[0].mxu0
    %504 = vdwg.mxu0
    %v505 = vmax.f32 %v187, 0.0
    %v506 = vmax.f32 %v192, 0.0
    %v507 = vmax.f32 %v197, 0.0
    %v508 = vmax.f32 %v202, 0.0
    %v509 = vmax.f32 %v207, 0.0
    %v510 = vmax.f32 %v212, 0.0
    %v511 = vmax.f32 %v217, 0.0
    %v512 = vmax.f32 %v222, 0.0
    %v513 = vmax.f32 %v227, 0.0
    %v514 = vmax.f32 %v232, 0.0
    %v515 = vmax.f32 %v237, 0.0
    %v516 = vmax.f32 %v242, 0.0
    %v517 = vmax.f32 %v247, 0.0
    %v518 = vmax.f32 %v252, 0.0
    %v519 = vmax.f32 %v257, 0.0
    %v520 = vmax.f32 %v262, 0.0
    %v521 = vmax.f32 %v267, 0.0
    %v522 = vmax.f32 %v272, 0.0
    %v523 = vmax.f32 %v277, 0.0
    %v524 = vmax.f32 %v282, 0.0
    %v525 = vmax.f32 %v287, 0.0
    %v526 = vmax.f32 %v292, 0.0
    %v527 = vmax.f32 %v297, 0.0
    %v528 = vmax.f32 %v302, 0.0
    %v529 = vmax.f32 %v307, 0.0
    %v530 = vmax.f32 %v312, 0.0
    %v531 = vmax.f32 %v317, 0.0
    %v532 = vmax.f32 %v322, 0.0
    %v533 = vmax.f32 %v327, 0.0
    %v534 = vmax.f32 %v332, 0.0
    %v535 = vmax.f32 %v337, 0.0
    %v536 = vmax.f32 %v342, 0.0
    %v537 = vmax.f32 %v347, 0.0
    %v538 = vmax.f32 %v352, 0.0
    %v539 = vmax.f32 %v357, 0.0
    %v540 = vmax.f32 %v362, 0.0
    %v541 = vmax.f32 %v367, 0.0
    %v542 = vmax.f32 %v372, 0.0
    %v543 = vmax.f32 %v377, 0.0
    %v544 = vmax.f32 %v382, 0.0
    %v545 = vmax.f32 %v387, 0.0
    %v546 = vmax.f32 %v392, 0.0
    %v547 = vmax.f32 %v397, 0.0
    %v548 = vmax.f32 %v402, 0.0
    %v549 = vmax.f32 %v407, 0.0
    %v550 = vmax.f32 %v412, 0.0
    %v551 = vmax.f32 %v417, 0.0
    %v552 = vmax.f32 %v422, 0.0
    %v553 = vmax.f32 %v427, 0.0
    %v554 = vmax.f32 %v432, 0.0
    %v555 = vmax.f32 %v437, 0.0
    %v556 = vmax.f32 %v442, 0.0
    %v557 = vmax.f32 %v447, 0.0
    %v558 = vmax.f32 %v452, 0.0
    %v559 = vmax.f32 %v457, 0.0
    %v560 = vmax.f32 %v462, 0.0
    %v561 = vmax.f32 %v467, 0.0
    %v562 = vmax.f32 %v472, 0.0
    %v563 = vmax.f32 %v477, 0.0
    %v564 = vmax.f32 %v482, 0.0
    %v565 = vmax.f32 %v487, 0.0
    %v566 = vmax.f32 %v492, 0.0
    %v567 = vmax.f32 %v497, 0.0
    %v568 = vmax.f32 %v502, 0.0
    %vm569 = vcmask 261120
    %v570 = vsel %vm569, %v505, 0.0
    %v571 = vsel %vm569, %v506, 0.0
    %v572 = vadd.f32 %v570, %v571
    %v573 = vsel %vm569, %v507, 0.0
    %v574 = vadd.f32 %v572, %v573
    %v575 = vsel %vm569, %v508, 0.0
    %v576 = vadd.f32 %v574, %v575
    %v577 = vsel %vm569, %v509, 0.0
    %v578 = vadd.f32 %v576, %v577
    %v579 = vsel %vm569, %v510, 0.0
    %v580 = vadd.f32 %v578, %v579
    %v581 = vsel %vm569, %v511, 0.0
    %v582 = vadd.f32 %v580, %v581
    %v583 = vsel %vm569, %v512, 0.0
    %v584 = vadd.f32 %v582, %v583
    %v585 = vsel %vm569, %v513, 0.0
    %v586 = vadd.f32 %v584, %v585
    %v587 = vsel %vm569, %v514, 0.0
    %v588 = vadd.f32 %v586, %v587
    %v589 = vsel %vm569, %v515, 0.0
    %v590 = vadd.f32 %v588, %v589
    %v591 = vsel %vm569, %v516, 0.0
    %v592 = vadd.f32 %v590, %v591
    %v593 = vsel %vm569, %v517, 0.0
    %v594 = vadd.f32 %v592, %v593
    %v595 = vsel %vm569, %v518, 0.0
    %v596 = vadd.f32 %v594, %v595
    %v597 = vsel %vm569, %v519, 0.0
    %v598 = vadd.f32 %v596, %v597
    %v599 = vsel %vm569, %v520, 0.0
    %v600 = vadd.f32 %v598, %v599
    %v601 = vsel %vm569, %v521, 0.0
    %v602 = vadd.f32 %v600, %v601
    %v603 = vsel %vm569, %v522, 0.0
    %v604 = vadd.f32 %v602, %v603
    %v605 = vsel %vm569, %v523, 0.0
    %v606 = vadd.f32 %v604, %v605
    %v607 = vsel %vm569, %v524, 0.0
    %v608 = vadd.f32 %v606, %v607
    %v609 = vsel %vm569, %v525, 0.0
    %v610 = vadd.f32 %v608, %v609
    %v611 = vsel %vm569, %v526, 0.0
    %v612 = vadd.f32 %v610, %v611
    %v613 = vsel %vm569, %v527, 0.0
    %v614 = vadd.f32 %v612, %v613
    %v615 = vsel %vm569, %v528, 0.0
    %v616 = vadd.f32 %v614, %v615
    %v617 = vsel %vm569, %v529, 0.0
    %v618 = vadd.f32 %v616, %v617
    %v619 = vsel %vm569, %v530, 0.0
    %v620 = vadd.f32 %v618, %v619
    %v621 = vsel %vm569, %v531, 0.0
    %v622 = vadd.f32 %v620, %v621
    %v623 = vsel %vm569, %v532, 0.0
    %v624 = vadd.f32 %v622, %v623
    %v625 = vsel %vm569, %v533, 0.0
    %v626 = vadd.f32 %v624, %v625
    %v627 = vsel %vm569, %v534, 0.0
    %v628 = vadd.f32 %v626, %v627
    %v629 = vsel %vm569, %v535, 0.0
    %v630 = vadd.f32 %v628, %v629
    %v631 = vsel %vm569, %v536, 0.0
    %v632 = vadd.f32 %v630, %v631
    %v633 = vrot.slane %v632, 4
    %v634 = vadd.f32 %v632, %v633
    %v635 = vrot.slane %v634, 2
    %v636 = vadd.f32 %v634, %v635
    %v637 = vrot.slane %v636, 1
    %v638 = vadd.f32 %v636, %v637
    %v639 = vsel %vm569, %v537, 0.0
    %v640 = vsel %vm569, %v538, 0.0
    %v641 = vadd.f32 %v639, %v640
    %v642 = vsel %vm569, %v539, 0.0
    %v643 = vadd.f32 %v641, %v642
    %v644 = vsel %vm569, %v540, 0.0
    %v645 = vadd.f32 %v643, %v644
    %v646 = vsel %vm569, %v541, 0.0
    %v647 = vadd.f32 %v645, %v646
    %v648 = vsel %vm569, %v542, 0.0
    %v649 = vadd.f32 %v647, %v648
    %v650 = vsel %vm569, %v543, 0.0
    %v651 = vadd.f32 %v649, %v650
    %v652 = vsel %vm569, %v544, 0.0
    %v653 = vadd.f32 %v651, %v652
    %v654 = vsel %vm569, %v545, 0.0
    %v655 = vadd.f32 %v653, %v654
    %v656 = vsel %vm569, %v546, 0.0
    %v657 = vadd.f32 %v655, %v656
    %v658 = vsel %vm569, %v547, 0.0
    %v659 = vadd.f32 %v657, %v658
    %v660 = vsel %vm569, %v548, 0.0
    %v661 = vadd.f32 %v659, %v660
    %v662 = vsel %vm569, %v549, 0.0
    %v663 = vadd.f32 %v661, %v662
    %v664 = vsel %vm569, %v550, 0.0
    %v665 = vadd.f32 %v663, %v664
    %v666 = vsel %vm569, %v551, 0.0
    %v667 = vadd.f32 %v665, %v666
    %v668 = vsel %vm569, %v552, 0.0
    %v669 = vadd.f32 %v667, %v668
    %v670 = vsel %vm569, %v553, 0.0
    %v671 = vadd.f32 %v669, %v670
    %v672 = vsel %vm569, %v554, 0.0
    %v673 = vadd.f32 %v671, %v672
    %v674 = vsel %vm569, %v555, 0.0
    %v675 = vadd.f32 %v673, %v674
    %v676 = vsel %vm569, %v556, 0.0
    %v677 = vadd.f32 %v675, %v676
    %v678 = vsel %vm569, %v557, 0.0
    %v679 = vadd.f32 %v677, %v678
    %v680 = vsel %vm569, %v558, 0.0
    %v681 = vadd.f32 %v679, %v680
    %v682 = vsel %vm569, %v559, 0.0
    %v683 = vadd.f32 %v681, %v682
    %v684 = vsel %vm569, %v560, 0.0
    %v685 = vadd.f32 %v683, %v684
    %v686 = vsel %vm569, %v561, 0.0
    %v687 = vadd.f32 %v685, %v686
    %v688 = vsel %vm569, %v562, 0.0
    %v689 = vadd.f32 %v687, %v688
    %v690 = vsel %vm569, %v563, 0.0
    %v691 = vadd.f32 %v689, %v690
    %v692 = vsel %vm569, %v564, 0.0
    %v693 = vadd.f32 %v691, %v692
    %v694 = vsel %vm569, %v565, 0.0
    %v695 = vadd.f32 %v693, %v694
    %v696 = vsel %vm569, %v566, 0.0
    %v697 = vadd.f32 %v695, %v696
    %v698 = vsel %vm569, %v567, 0.0
    %v699 = vadd.f32 %v697, %v698
    %v700 = vsel %vm569, %v568, 0.0
    %v701 = vadd.f32 %v699, %v700
    %v702 = vrot.slane %v701, 4
    %v703 = vadd.f32 %v701, %v702
    %v704 = vrot.slane %v703, 2
    %v705 = vadd.f32 %v703, %v704
    %v706 = vrot.slane %v705, 1
    %v707 = vadd.f32 %v705, %v706
    %v708 = vrcp.pop 256.0
    %v709 = vmul.f32 %v638, %v708
    %v710 = vmul.f32 %v707, %v708
    %v711 = vld [vmem:[%s3] sm:$0xff]
    %v712 = vld [vmem:[%s3 + $0x8] sm:$0xff]
    %v713 = vld [vmem:[%s3 + $0x10] sm:$0xff]
    %v714 = vld [vmem:[%s3 + $0x18] sm:$0xff]
    %v715 = vld [vmem:[%s4] sm:$0x1]
    %v717 = vlaneseq
    %v718 = vshrl.u32 %v717, 7
    %v719 = vsub.s32 0, %v718
    %v720 = vrot.slane %v715, %v719
    %vm724 = vcmask 1041409
    %v725 = vsel %vm724, %v710, %v709
    %v726 = vsel %vm569, %v725, 0
    %728 = vmatprep.subr.mxu0 0.0
    %729 = vmatpush1.msra.mxu0 %v711
    %730 = vmatprep.subr.mxu0 0.0
    %731 = vmatpush1.msra.mxu0 %v712
    %732 = vmatprep.subr.mxu0 0.0
    %733 = vmatpush1.msra.mxu0 %v713
    %734 = vmatprep.subr.mxu0 0.0
    %735 = vmatpush1.msra.mxu0 %v714
    %736 = vmatprep.subr.mxu0 0.0
    %737 = vmatpush1.msra.mxu0 0.0
    %738 = vmatprep.subr.mxu0 0.0
    %739 = vmatpush1.msra.mxu0 0.0
    %740 = vmatprep.subr.mxu0 0.0
    %741 = vmatpush1.msra.mxu0 0.0
    %742 = vmatprep.subr.mxu0 0.0
    %743 = vmatpush1.msra.mxu0 0.0
    %744 = vmatprep.subr.mxu0 0.0
    %745 = vmatpush1.msra.mxu0 0.0
    %746 = vmatprep.subr.mxu0 0.0
    %747 = vmatpush1.msra.mxu0 0.0
    %748 = vmatprep.subr.mxu0 0.0
    %749 = vmatpush1.msra.mxu0 0.0
    %750 = vmatprep.subr.mxu0 0.0
    %751 = vmatpush1.msra.mxu0 0.0
    %752 = vmatprep.subr.mxu0 0.0
    %753 = vmatpush1.msra.mxu0 0.0
    %754 = vmatprep.subr.mxu0 0.0
    %755 = vmatpush1.msra.mxu0 0.0
    %756 = vmatprep.subr.mxu0 0.0
    %757 = vmatpush1.msra.mxu0 0.0
    %758 = vmatprep.subr.mxu0 0.0
    %759 = vmatpush1.msra.mxu0 0.0
    %760 = vmatprep.subr.mxu0 0.0
    %761 = vmatpush1.msra.mxu0 0.0
    %762 = vmatprep.subr.mxu0 0.0
    %763 = vmatpush1.msra.mxu0 0.0
    %764 = vmatprep.subr.mxu0 0.0
    %765 = vmatpush1.msra.mxu0 0.0
    %766 = vmatprep.subr.mxu0 0.0
    %767 = vmatpush1.msra.mxu0 0.0
    %768 = vmatprep.subr.mxu0 0.0
    %769 = vmatpush1.msra.mxu0 0.0
    %770 = vmatprep.subr.mxu0 0.0
    %771 = vmatpush1.msra.mxu0 0.0
    %772 = vmatprep.subr.mxu0 0.0
    %773 = vmatpush1.msra.mxu0 0.0
    %774 = vmatprep.subr.mxu0 0.0
    %775 = vmatpush1.msra.mxu0 0.0
    %776 = vmatprep.subr.mxu0 0.0
    %777 = vmatpush1.msra.mxu0 0.0
    %778 = vmatprep.subr.mxu0 0.0
    %779 = vmatpush1.msra.mxu0 0.0
    %780 = vmatprep.subr.mxu0 0.0
    %781 = vmatpush1.msra.mxu0 0.0
    %782 = vmatprep.subr.mxu0 0.0
    %783 = vmatpush1.msra.mxu0 0.0
    %784 = vmatprep.subr.mxu0 0.0
    %785 = vmatpush1.msra.mxu0 0.0
    %786 = vmatprep.subr.mxu0 0.0
    %787 = vmatpush1.msra.mxu0 0.0
    %788 = vmatprep.subr.mxu0 0.0
    %789 = vmatpush1.msra.mxu0 0.0
    %790 = vmatprep.subr.mxu0 0.0
    %791 = vmatpush1.msra.mxu0 0.0
    %792 = vmatprep.mubr.f32.mxu0 0.0
    %793 = vmatmul.mubr.f32.gmra.mrb[0].mxu0 %v726
    %v794 = vpop.f32.mrb[0].mxu0
    %v795 = vadd.f32 %v720, %v794
    %v796 = vpop.f32.mrb[0].mxu0
    %797 = vdwg.mxu0
    %v798 = vmax.f32 %v795, 0.0
    %v799 = vld [vmem:[%s5] sm:$0xff]
    %v800 = vld [vmem:[%s5 + $0x8] sm:$0xff]
    %v801 = vld [vmem:[%s6] sm:$0x1]
    %v803 = vlaneseq
    %v804 = vshrl.u32 %v803, 7
    %v805 = vsub.s32 0, %v804
    %v806 = vrot.slane %v801, %v805
    %vm808 = vcmask 130048
    %v810 = vsel %vm808, %v798, 0
    %812 = vmatprep.subr.mxu0 0.0
    %813 = vmatpush1.msra.mxu0 %v799
    %814 = vmatprep.subr.mxu0 0.0
    %815 = vmatpush1.msra.mxu0 %v800
    %816 = vmatprep.subr.mxu0 0.0
    %817 = vmatpush1.msra.mxu0 0.0
    %818 = vmatprep.subr.mxu0 0.0
    %819 = vmatpush1.msra.mxu0 0.0
    %820 = vmatprep.subr.mxu0 0.0
    %821 = vmatpush1.msra.mxu0 0.0
    %822 = vmatprep.subr.mxu0 0.0
    %823 = vmatpush1.msra.mxu0 0.0
    %824 = vmatprep.subr.mxu0 0.0
    %825 = vmatpush1.msra.mxu0 0.0
    %826 = vmatprep.subr.mxu0 0.0
    %827 = vmatpush1.msra.mxu0 0.0
    %828 = vmatprep.subr.mxu0 0.0
    %829 = vmatpush1.msra.mxu0 0.0
    %830 = vmatprep.subr.mxu0 0.0
    %831 = vmatpush1.msra.mxu0 0.0
    %832 = vmatprep.subr.mxu0 0.0
    %833 = vmatpush1.msra.mxu0 0.0
    %834 = vmatprep.subr.mxu0 0.0
    %835 = vmatpush1.msra.mxu0 0.0
    %836 = vmatprep.subr.mxu0 0.0
    %837 = vmatpush1.msra.mxu0 0.0
    %838 = vmatprep.subr.mxu0 0.0
    %839 = vmatpush1.msra.mxu0 0.0
    %840 = vmatprep.subr.mxu0 0.0
    %841 = vmatpush1.msra.mxu0 0.0
    %842 = vmatprep.subr.mxu0 0.0
    %843 = vmatpush1.msra.mxu0 0.0
    %844 = vmatprep.subr.mxu0 0.0
    %845 = vmatpush1.msra.mxu0 0.0
    %846 = vmatprep.subr.mxu0 0.0
    %847 = vmatpush1.msra.mxu0 0.0
    %848 = vmatprep.subr.mxu0 0.0
    %849 = vmatpush1.msra.mxu0 0.0
    %850 = vmatprep.subr.mxu0 0.0
    %851 = vmatpush1.msra.mxu0 0.0
    %852 = vmatprep.subr.mxu0 0.0
    %853 = vmatpush1.msra.mxu0 0.0
    %854 = vmatprep.subr.mxu0 0.0
    %855 = vmatpush1.msra.mxu0 0.0
    %856 = vmatprep.subr.mxu0 0.0
    %857 = vmatpush1.msra.mxu0 0.0
    %858 = vmatprep.subr.mxu0 0.0
    %859 = vmatpush1.msra.mxu0 0.0
    %860 = vmatprep.subr.mxu0 0.0
    %861 = vmatpush1.msra.mxu0 0.0
    %862 = vmatprep.subr.mxu0 0.0
    %863 = vmatpush1.msra.mxu0 0.0
    %864 = vmatprep.subr.mxu0 0.0
    %865 = vmatpush1.msra.mxu0 0.0
    %866 = vmatprep.subr.mxu0 0.0
    %867 = vmatpush1.msra.mxu0 0.0
    %868 = vmatprep.subr.mxu0 0.0
    %869 = vmatpush1.msra.mxu0 0.0
    %870 = vmatprep.subr.mxu0 0.0
    %871 = vmatpush1.msra.mxu0 0.0
    %872 = vmatprep.subr.mxu0 0.0
    %873 = vmatpush1.msra.mxu0 0.0
    %874 = vmatprep.subr.mxu0 0.0
    %875 = vmatpush1.msra.mxu0 0.0
    %876 = vmatprep.mubr.f32.mxu0 0.0
    %877 = vmatmul.mubr.f32.gmra.mrb[0].mxu0 %v810
    %v878 = vpop.f32.mrb[0].mxu0
    %v879 = vadd.f32 %v806, %v878
    %v880 = vpop.f32.mrb[0].mxu0
    %881 = vdwg.mxu0
    %v882 = vmax.f32 %v879, 0.0
    %v883 = vld [vmem:[%s7] sm:$0xff]
    %v884 = vld [vmem:[%s7 + $0x8] sm:$0xff]
    %v885 = vld [vmem:[%s8] sm:$0x1]
    %v887 = vlaneseq
    %v888 = vshrl.u32 %v887, 7
    %v889 = vsub.s32 0, %v888
    %v890 = vrot.slane %v885, %v889
    %v893 = vsel %vm808, %v882, 0
    %895 = vmatprep.subr.mxu0 0.0
    %896 = vmatpush1.msra.mxu0 %v883
    %897 = vmatprep.subr.mxu0 0.0
    %898 = vmatpush1.msra.mxu0 %v884
    %899 = vmatprep.subr.mxu0 0.0
    %900 = vmatpush1.msra.mxu0 0.0
    %901 = vmatprep.subr.mxu0 0.0
    %902 = vmatpush1.msra.mxu0 0.0
    %903 = vmatprep.subr.mxu0 0.0
    %904 = vmatpush1.msra.mxu0 0.0
    %905 = vmatprep.subr.mxu0 0.0
    %906 = vmatpush1.msra.mxu0 0.0
    %907 = vmatprep.subr.mxu0 0.0
    %908 = vmatpush1.msra.mxu0 0.0
    %909 = vmatprep.subr.mxu0 0.0
    %910 = vmatpush1.msra.mxu0 0.0
    %911 = vmatprep.subr.mxu0 0.0
    %912 = vmatpush1.msra.mxu0 0.0
    %913 = vmatprep.subr.mxu0 0.0
    %914 = vmatpush1.msra.mxu0 0.0
    %915 = vmatprep.subr.mxu0 0.0
    %916 = vmatpush1.msra.mxu0 0.0
    %917 = vmatprep.subr.mxu0 0.0
    %918 = vmatpush1.msra.mxu0 0.0
    %919 = vmatprep.subr.mxu0 0.0
    %920 = vmatpush1.msra.mxu0 0.0
    %921 = vmatprep.subr.mxu0 0.0
    %922 = vmatpush1.msra.mxu0 0.0
    %923 = vmatprep.subr.mxu0 0.0
    %924 = vmatpush1.msra.mxu0 0.0
    %925 = vmatprep.subr.mxu0 0.0
    %926 = vmatpush1.msra.mxu0 0.0
    %927 = vmatprep.subr.mxu0 0.0
    %928 = vmatpush1.msra.mxu0 0.0
    %929 = vmatprep.subr.mxu0 0.0
    %930 = vmatpush1.msra.mxu0 0.0
    %931 = vmatprep.subr.mxu0 0.0
    %932 = vmatpush1.msra.mxu0 0.0
    %933 = vmatprep.subr.mxu0 0.0
    %934 = vmatpush1.msra.mxu0 0.0
    %935 = vmatprep.subr.mxu0 0.0
    %936 = vmatpush1.msra.mxu0 0.0
    %937 = vmatprep.subr.mxu0 0.0
    %938 = vmatpush1.msra.mxu0 0.0
    %939 = vmatprep.subr.mxu0 0.0
    %940 = vmatpush1.msra.mxu0 0.0
    %941 = vmatprep.subr.mxu0 0.0
    %942 = vmatpush1.msra.mxu0 0.0
    %943 = vmatprep.subr.mxu0 0.0
    %944 = vmatpush1.msra.mxu0 0.0
    %945 = vmatprep.subr.mxu0 0.0
    %946 = vmatpush1.msra.mxu0 0.0
    %947 = vmatprep.subr.mxu0 0.0
    %948 = vmatpush1.msra.mxu0 0.0
    %949 = vmatprep.subr.mxu0 0.0
    %950 = vmatpush1.msra.mxu0 0.0
    %951 = vmatprep.subr.mxu0 0.0
    %952 = vmatpush1.msra.mxu0 0.0
    %953 = vmatprep.subr.mxu0 0.0
    %954 = vmatpush1.msra.mxu0 0.0
    %955 = vmatprep.subr.mxu0 0.0
    %956 = vmatpush1.msra.mxu0 0.0
    %957 = vmatprep.subr.mxu0 0.0
    %958 = vmatpush1.msra.mxu0 0.0
    %959 = vmatprep.mubr.f32.mxu0 0.0
    %960 = vmatmul.mubr.f32.gmra.mrb[0].mxu0 %v893
    %v961 = vpop.f32.mrb[0].mxu0
    %v962 = vadd.f32 %v890, %v961
    %v963 = vpop.f32.mrb[0].mxu0
    %964 = vdwg.mxu0
    %965 = vst [vmem:[#allocation2] sm:$0x3] %v962
    // Predicated region
    $region38: #{single_source_net_forward.1} parent=1 // pred_check
      _
    $region39: #{single_source_net_forward.1} parent=1 // pred_check_branch
      %967 = sbr.rel (0) target = $region41
    $region40: #{single_source_net_forward.1} parent=1 // pred_region
      %s969 = ssub.s32 32, 32
      %970 = vsyncadd [#allocation3], %s969
      %s972 = sshll.u32 [#allocation2], 4
      %s973 = int_to_ptr.vmem [resolvable:$true] %s972
      %975 = dma.vmem_to_hbm [thread:$0]  %s973, 32, %s9, [#allocation3]
    $region41: #{single_source_net_forward.1} parent=1 // pred_fallthru
      _
    // Predicated region
    $region42: #{single_source_net_forward.1} parent=1 // pred_check
      _
    $region43: #{single_source_net_forward.1} parent=1 // pred_check_branch
      %977 = sbr.rel (0) target = $region45
    $region44: #{single_source_net_forward.1} parent=1 // pred_region
      %978 = dma.done [#allocation3], 32
    $region45: #{single_source_net_forward.1} parent=1 // pred_fallthru
      _
    %979 = vsyncpa [#allocation3], 1

</llo_original>
